<compile_context>
chip_gen: v5e
topology: v5e:2x2
jax: 0.10.0
libtpu: 0.0.40
codegen_flags: <defaults>
</compile_context>

<pallas_src>
import math
import functools

import jax
import jax.numpy as jnp
from jax.experimental import pallas as pl
from jax.experimental.pallas import tpu as pltpu


def cross_attention_kernel(x_ref, enc_ref, mask_ref,
                           wq_ref, bq_ref, wk_ref, bk_ref, wv_ref, bv_ref,
                           wp_ref, bp_ref,
                           y_ref, att_ref, *, n_head, softmax_exp_dtype):
    BB, T, C = x_ref.shape
    _, T_E, Ce = enc_ref.shape
    hd = C // n_head
    HB = n_head * BB
    f32 = jnp.float32
    cdt = x_ref.dtype                         # compute dtype (bf16), set by wrapper

    # ---- Activations: leading-dim merges only (layout-free). ----
    x2 = x_ref[...].reshape(BB * T, C)        # (BB*T,   C )
    e2 = enc_ref[...].reshape(BB * T_E, Ce)   # (BB*T_E, Ce)

    # ---- Full-width 2D projections (N = C output lanes), f32 accumulation. ----
    q2 = jnp.dot(x2, wq_ref[...], preferred_element_type=f32) + bq_ref[...]   # (BB*T,   C) f32
    k2 = jnp.dot(e2, wk_ref[...], preferred_element_type=f32) + bk_ref[...]   # (BB*T_E, C) f32
    v2 = jnp.dot(e2, wv_ref[...], preferred_element_type=f32) + bv_ref[...]   # (BB*T_E, C) f32

    # ---- Head-major relayout: static lane slices stacked on a NEW leading
    #      batch axis (row index = h*BB + b).  No activation/weight broadcasts.
    def to_heads(a2, L):
        a3 = a2.reshape(BB, L, C)
        return jnp.concatenate(
            [a3[:, :, h * hd:(h + 1) * hd] for h in range(n_head)], axis=0)   # (HB, L, hd)

    q_h = to_heads(q2, T).astype(cdt)         # (HB, T,   hd)
    k_h = to_heads(k2, T_E).astype(cdt)       # (HB, T_E, hd)
    v_h = to_heads(v2, T_E).astype(cdt)       # (HB, T_E, hd)

    # ---- Scores + mask + softmax (mask broadcast over T is implicit). ----
    scale = 1.0 / math.sqrt(hd)
    att = jnp.einsum('btd,bsd->bts', q_h, k_h,
                     preferred_element_type=f32) * scale                      # (HB, T, T_E) f32

    m = jnp.concatenate([mask_ref[...]] * n_head, axis=0) > 0                 # (HB, 1, T_E)
    neg = jnp.finfo(f32).min
    att = jnp.where(m, neg, att)
    att_max = jnp.max(att, axis=-1, keepdims=True)
    p_un = jnp.exp((att - att_max).astype(softmax_exp_dtype)).astype(f32)
    denom = jnp.sum(p_un, axis=-1, keepdims=True)
    # Exact reciprocal: `att` is a module output consumed downstream.
    p = p_un * pl.reciprocal(denom, approx=False)
    p = jnp.where(m, 0.0, p)                                                  # (HB, T, T_E) f32
    # attn_drop / resid_drop: identity in eval mode.

    # ---- P @ V (head-batched), lane re-interleave, full-width output proj. ----
    y_h = jnp.einsum('bts,bsd->btd', p.astype(cdt), v_h,
                     preferred_element_type=f32)                              # (HB, T, hd)
    y_lane = jnp.concatenate(
        [y_h[h * BB:(h + 1) * BB] for h in range(n_head)], axis=-1)           # (BB, T, C)
    y2 = jnp.dot(y_lane.reshape(BB * T, C).astype(cdt), wp_ref[...],
                 preferred_element_type=f32) + bp_ref[...]                    # (BB*T, C) f32

    y_ref[...] = y2.reshape(BB, T, C).astype(y_ref.dtype)
    att_ref[...] = (p.reshape(n_head, BB, T, T_E).sum(axis=0)
                    * (1.0 / n_head)).astype(att_ref.dtype)


def cross_attention(x, enc, mask, params, n_head, *, block_b=None,
                    compute_dtype=jnp.bfloat16, softmax_exp_dtype=jnp.float32):
    """mask: (B, 1, T_E) int, nonzero == masked key position.

    softmax_exp_dtype: keep float32 on v5e; bfloat16 is fine on v6e/v7x (bf16 EUP).
    """
    B, T, C = x.shape
    _, T_E, Ce = enc.shape
    assert C % n_head == 0

    if block_b is None:
        block_b = 1 if B > 1 else B           # >= 2 parallel grid steps when possible
    assert B % block_b == 0
    nb = B // block_b

    # bf16 activations/weights (halves DMA bytes); biases stay f32 (post-acc add).
    x_c = x.astype(compute_dtype)
    enc_c = enc.astype(compute_dtype)
    mask_i = mask.astype(jnp.int32)
    wq = params["wq"].astype(compute_dtype); bq = params["bq"].astype(jnp.float32)
    wk = params["wk"].astype(compute_dtype); bk = params["bk"].astype(jnp.float32)
    wv = params["wv"].astype(compute_dtype); bv = params["bv"].astype(jnp.float32)
    wp = params["wp"].astype(compute_dtype); bp = params["bp"].astype(jnp.float32)

    # Rough per-step VMEM footprint -> explicit scoped-VMEM limit (defaults are
    # far below physical on every chip); capped at v7x's 64 MiB physical VMEM.
    cb = jnp.dtype(compute_dtype).itemsize
    est = (2 * block_b * (T * C + T_E * Ce) * cb            # x, enc (double-buffered)
           + 2 * block_b * T_E * 4                          # mask
           + (2 * C * C + 2 * Ce * C) * cb + 4 * C * 4      # weights (single-buffered) + biases
           + 2 * block_b * (T * C + T * T_E) * 4            # y, att output blocks
           + 4 * (block_b * (3 * T * C + 2 * T_E * C)       # q/k/v f32 intermediates
                  + 3 * n_head * block_b * T * T_E))        # att / p_un / p live copies
    vmem_limit = int(min(max(2 * est, 32 << 20), 64 << 20))

    blk3 = lambda s: pl.BlockSpec(s, lambda i: (i, 0, 0))                     # batch-blocked
    wspec = lambda s: pl.BlockSpec(s, lambda i: (0, 0),
                                   pipeline_mode=pl.Buffered(1))              # replicated, 1-buffered

    kernel = functools.partial(cross_attention_kernel, n_head=n_head,
                               softmax_exp_dtype=softmax_exp_dtype)
    y, att = pl.pallas_call(
        kernel,
        out_shape=(
            jax.ShapeDtypeStruct((B, T, C), jnp.float32),
            jax.ShapeDtypeStruct((B, T, T_E), jnp.float32),
        ),
        grid=(nb,),
        in_specs=[
            blk3((block_b, T, C)),            # x
            blk3((block_b, T_E, Ce)),         # encoder_output
            blk3((block_b, 1, T_E)),          # mask
            wspec((C, C)),  wspec((1, C)),    # Wq, bq
            wspec((Ce, C)), wspec((1, C)),    # Wk, bk
            wspec((Ce, C)), wspec((1, C)),    # Wv, bv
            wspec((C, C)),  wspec((1, C)),    # Wproj, bproj
        ],
        out_specs=(
            blk3((block_b, T, C)),
            blk3((block_b, T, T_E)),
        ),
        compiler_params=pltpu.CompilerParams(
            dimension_semantics=("parallel",),
            vmem_limit_bytes=vmem_limit),
    )(x_c, enc_c, mask_i, wq, bq, wk, bk, wv, bv, wp, bp)
    return y, att


def reference(x, enc, mask, params, n_head):
    """Pure-JAX replica of the PyTorch forward (eval mode, f32)."""
    B, T, C = x.shape
    _, T_E, _ = enc.shape
    hd = C // n_head
    hi = jax.lax.Precision.HIGHEST
    q = jnp.einsum("btc,cd->btd", x, params["wq"], precision=hi) + params["bq"][0]
    k = jnp.einsum("bec,cd->bed", enc, params["wk"], precision=hi) + params["bk"][0]
    v = jnp.einsum("bec,cd->bed", enc, params["wv"], precision=hi) + params["bv"][0]
    q = q.reshape(B, T, n_head, hd).transpose(0, 2, 1, 3)
    k = k.reshape(B, T_E, n_head, hd).transpose(0, 2, 1, 3)
    v = v.reshape(B, T_E, n_head, hd).transpose(0, 2, 1, 3)
    att = jnp.einsum("bhtd,bhsd->bhts", q, k, precision=hi) / math.sqrt(hd)
    m = mask[:, None, :, :] > 0                     # (B,1,1,T_E)
    att = jnp.where(m, jnp.finfo(jnp.float32).min, att)
    att = jax.nn.softmax(att, axis=-1)
    att = jnp.where(m, 0.0, att)
    y = jnp.einsum("bhts,bhsd->bhtd", att, v, precision=hi)
    y = y.transpose(0, 2, 1, 3).reshape(B, T, C)
    y = jnp.einsum("btc,cd->btd", y, params["wp"], precision=hi) + params["bp"][0]
    return y, att.mean(axis=1)


if __name__ == "__main__":
    # Small shapes consistent with the module.
    B, T, T_E = 2, 8, 12
    n_embd, condition_embd, n_head = 32, 24, 4

    key = jax.random.PRNGKey(0)
    ks = jax.random.split(key, 12)

    x = jax.random.normal(ks[0], (B, T, n_embd), jnp.float32)
    enc = jax.random.normal(ks[1], (B, T_E, condition_embd), jnp.float32)
    # padding mask: last few encoder positions masked per batch element
    valid_len = jnp.array([T_E, T_E - 3], jnp.int32)
    mask = (jnp.arange(T_E)[None, None, :] >= valid_len[:, None, None]).astype(jnp.int32)

    # Deterministic parameters (nn.Linear weights stored transposed: (in, out)).
    params = {
        "wq": 0.02 * jax.random.normal(ks[2], (n_embd, n_embd), jnp.float32),
        "bq": 0.01 * jax.random.normal(ks[3], (1, n_embd), jnp.float32),
        "wk": 0.02 * jax.random.normal(ks[4], (condition_embd, n_embd), jnp.float32),
        "bk": 0.01 * jax.random.normal(ks[5], (1, n_embd), jnp.float32),
        "wv": 0.02 * jax.random.normal(ks[6], (condition_embd, n_embd), jnp.float32),
        "bv": 0.01 * jax.random.normal(ks[7], (1, n_embd), jnp.float32),
        "wp": 0.02 * jax.random.normal(ks[8], (n_embd, n_embd), jnp.float32),
        "bp": 0.01 * jax.random.normal(ks[9], (1, n_embd), jnp.float32),
    }

    y, att = cross_attention(x, enc, mask, params, n_head)
    jax.block_until_ready((y, att))

    y_ref, att_ref = reference(x, enc, mask, params, n_head)
    assert y.shape == (B, T, n_embd) and att.shape == (B, T, T_E)
    # Tolerances account for bf16 MXU operands.
    assert jnp.allclose(y, y_ref, rtol=2e-2, atol=2e-2), "y mismatch"
    assert jnp.allclose(att, att_ref, rtol=2e-2, atol=2e-2), "att mismatch"

    print("KERNEL_OK")
</pallas_src>

<mosaic_0001>
module attributes {stable_mosaic.version = 11 : i64} {
  func.func @cross_attention_kernel(%arg0: i32, %arg1: memref<1x8x32xbf16, #tpu.memory_space<vmem>>, %arg2: memref<1x12x24xbf16, #tpu.memory_space<vmem>>, %arg3: memref<1x1x12xi32, #tpu.memory_space<vmem>>, %arg4: memref<32x32xbf16, #tpu.memory_space<vmem>>, %arg5: memref<1x32xf32, #tpu.memory_space<vmem>>, %arg6: memref<24x32xbf16, #tpu.memory_space<vmem>>, %arg7: memref<1x32xf32, #tpu.memory_space<vmem>>, %arg8: memref<24x32xbf16, #tpu.memory_space<vmem>>, %arg9: memref<1x32xf32, #tpu.memory_space<vmem>>, %arg10: memref<32x32xbf16, #tpu.memory_space<vmem>>, %arg11: memref<1x32xf32, #tpu.memory_space<vmem>>, %arg12: memref<1x8x32xf32, #tpu.memory_space<vmem>>, %arg13: memref<1x8x12xf32, #tpu.memory_space<vmem>>) attributes {dimension_semantics = [#tpu.dimension_semantics<parallel>], iteration_bounds = array<i64: 2>, scalar_prefetch = 0 : i64, scratch_operands = 0 : i64, tpu.core_type = #tpu.core_type<tc>, window_params = [{transform_indices = @transform_0, window_bounds = array<i64: 1, 8, 32>}, {transform_indices = @transform_1, window_bounds = array<i64: 1, 12, 24>}, {transform_indices = @transform_2, window_bounds = array<i64: 1, 1, 12>}, {pipeline_mode = #tpu.pipeline_mode<synchronous>, transform_indices = @transform_3, window_bounds = array<i64: 32, 32>}, {pipeline_mode = #tpu.pipeline_mode<synchronous>, transform_indices = @transform_4, window_bounds = array<i64: 1, 32>}, {pipeline_mode = #tpu.pipeline_mode<synchronous>, transform_indices = @transform_5, window_bounds = array<i64: 24, 32>}, {pipeline_mode = #tpu.pipeline_mode<synchronous>, transform_indices = @transform_6, window_bounds = array<i64: 1, 32>}, {pipeline_mode = #tpu.pipeline_mode<synchronous>, transform_indices = @transform_7, window_bounds = array<i64: 24, 32>}, {pipeline_mode = #tpu.pipeline_mode<synchronous>, transform_indices = @transform_8, window_bounds = array<i64: 1, 32>}, {pipeline_mode = #tpu.pipeline_mode<synchronous>, transform_indices = @transform_9, window_bounds = array<i64: 32, 32>}, {pipeline_mode = #tpu.pipeline_mode<synchronous>, transform_indices = @transform_10, window_bounds = array<i64: 1, 32>}, {transform_indices = @transform_11, window_bounds = array<i64: 1, 8, 32>}, {transform_indices = @transform_12, window_bounds = array<i64: 1, 8, 12>}]} {
    %c0 = arith.constant 0 : index
    %c0_0 = arith.constant 0 : index
    %c0_1 = arith.constant 0 : index
    %0 = vector.load %arg1[%c0, %c0_0, %c0_1] : memref<1x8x32xbf16, #tpu.memory_space<vmem>>, vector<1x8x32xbf16>
    %1 = vector.shape_cast %0 : vector<1x8x32xbf16> to vector<8x32xbf16>
    %c0_2 = arith.constant 0 : index
    %c0_3 = arith.constant 0 : index
    %c0_4 = arith.constant 0 : index
    %2 = vector.load %arg2[%c0_2, %c0_3, %c0_4] : memref<1x12x24xbf16, #tpu.memory_space<vmem>>, vector<1x12x24xbf16>
    %3 = vector.shape_cast %2 : vector<1x12x24xbf16> to vector<12x24xbf16>
    %c0_5 = arith.constant 0 : index
    %c0_6 = arith.constant 0 : index
    %4 = vector.load %arg4[%c0_5, %c0_6] : memref<32x32xbf16, #tpu.memory_space<vmem>>, vector<32x32xbf16>
    %cst = arith.constant dense<0.000000e+00> : vector<8x32xf32>
    %5 = tpu.matmul %1, %4, %cst {dimension_numbers = #tpu.dot_dimension_numbers<[1], [0], [0], [1], [0, 0, 1, 1], [], []>} : vector<8x32xbf16>, vector<32x32xbf16>, vector<8x32xf32> -> vector<8x32xf32>
    %c0_7 = arith.constant 0 : index
    %c0_8 = arith.constant 0 : index
    %6 = vector.load %arg5[%c0_7, %c0_8] : memref<1x32xf32, #tpu.memory_space<vmem>>, vector<1x32xf32>
    %7 = vector.broadcast %6 : vector<1x32xf32> to vector<8x32xf32>
    %8 = arith.addf %5, %7 : vector<8x32xf32>
    %c0_9 = arith.constant 0 : index
    %c0_10 = arith.constant 0 : index
    %9 = vector.load %arg6[%c0_9, %c0_10] : memref<24x32xbf16, #tpu.memory_space<vmem>>, vector<24x32xbf16>
    %cst_11 = arith.constant dense<0.000000e+00> : vector<12x32xf32>
    %10 = tpu.matmul %3, %9, %cst_11 {dimension_numbers = #tpu.dot_dimension_numbers<[1], [0], [0], [1], [0, 0, 1, 1], [], []>} : vector<12x24xbf16>, vector<24x32xbf16>, vector<12x32xf32> -> vector<12x32xf32>
    %c0_12 = arith.constant 0 : index
    %c0_13 = arith.constant 0 : index
    %11 = vector.load %arg7[%c0_12, %c0_13] : memref<1x32xf32, #tpu.memory_space<vmem>>, vector<1x32xf32>
    %12 = vector.broadcast %11 : vector<1x32xf32> to vector<12x32xf32>
    %13 = arith.addf %10, %12 : vector<12x32xf32>
    %c0_14 = arith.constant 0 : index
    %c0_15 = arith.constant 0 : index
    %14 = vector.load %arg8[%c0_14, %c0_15] : memref<24x32xbf16, #tpu.memory_space<vmem>>, vector<24x32xbf16>
    %cst_16 = arith.constant dense<0.000000e+00> : vector<12x32xf32>
    %15 = tpu.matmul %3, %14, %cst_16 {dimension_numbers = #tpu.dot_dimension_numbers<[1], [0], [0], [1], [0, 0, 1, 1], [], []>} : vector<12x24xbf16>, vector<24x32xbf16>, vector<12x32xf32> -> vector<12x32xf32>
    %c0_17 = arith.constant 0 : index
    %c0_18 = arith.constant 0 : index
    %16 = vector.load %arg9[%c0_17, %c0_18] : memref<1x32xf32, #tpu.memory_space<vmem>>, vector<1x32xf32>
    %17 = vector.broadcast %16 : vector<1x32xf32> to vector<12x32xf32>
    %18 = arith.addf %15, %17 : vector<12x32xf32>
    %19 = vector.shape_cast %8 : vector<8x32xf32> to vector<1x8x32xf32>
    %20 = vector.extract_strided_slice %19 {offsets = [0, 0, 0], sizes = [1, 8, 8], strides = [1, 1, 1]} : vector<1x8x32xf32> to vector<1x8x8xf32>
    %21 = vector.extract_strided_slice %19 {offsets = [0, 0, 8], sizes = [1, 8, 8], strides = [1, 1, 1]} : vector<1x8x32xf32> to vector<1x8x8xf32>
    %22 = vector.extract_strided_slice %19 {offsets = [0, 0, 16], sizes = [1, 8, 8], strides = [1, 1, 1]} : vector<1x8x32xf32> to vector<1x8x8xf32>
    %23 = vector.extract_strided_slice %19 {offsets = [0, 0, 24], sizes = [1, 8, 8], strides = [1, 1, 1]} : vector<1x8x32xf32> to vector<1x8x8xf32>
    %24 = tpu.concatenate %20, %21, %22, %23 in 0 : vector<1x8x8xf32>, vector<1x8x8xf32>, vector<1x8x8xf32>, vector<1x8x8xf32> -> vector<4x8x8xf32>
    %25 = arith.truncf %24 : vector<4x8x8xf32> to vector<4x8x8xbf16>
    %26 = vector.shape_cast %13 : vector<12x32xf32> to vector<1x12x32xf32>
    %27 = vector.extract_strided_slice %26 {offsets = [0, 0, 0], sizes = [1, 12, 8], strides = [1, 1, 1]} : vector<1x12x32xf32> to vector<1x12x8xf32>
    %28 = vector.extract_strided_slice %26 {offsets = [0, 0, 8], sizes = [1, 12, 8], strides = [1, 1, 1]} : vector<1x12x32xf32> to vector<1x12x8xf32>
    %29 = vector.extract_strided_slice %26 {offsets = [0, 0, 16], sizes = [1, 12, 8], strides = [1, 1, 1]} : vector<1x12x32xf32> to vector<1x12x8xf32>
    %30 = vector.extract_strided_slice %26 {offsets = [0, 0, 24], sizes = [1, 12, 8], strides = [1, 1, 1]} : vector<1x12x32xf32> to vector<1x12x8xf32>
    %31 = tpu.concatenate %27, %28, %29, %30 in 0 : vector<1x12x8xf32>, vector<1x12x8xf32>, vector<1x12x8xf32>, vector<1x12x8xf32> -> vector<4x12x8xf32>
    %32 = arith.truncf %31 : vector<4x12x8xf32> to vector<4x12x8xbf16>
    %33 = vector.shape_cast %18 : vector<12x32xf32> to vector<1x12x32xf32>
    %34 = vector.extract_strided_slice %33 {offsets = [0, 0, 0], sizes = [1, 12, 8], strides = [1, 1, 1]} : vector<1x12x32xf32> to vector<1x12x8xf32>
    %35 = vector.extract_strided_slice %33 {offsets = [0, 0, 8], sizes = [1, 12, 8], strides = [1, 1, 1]} : vector<1x12x32xf32> to vector<1x12x8xf32>
    %36 = vector.extract_strided_slice %33 {offsets = [0, 0, 16], sizes = [1, 12, 8], strides = [1, 1, 1]} : vector<1x12x32xf32> to vector<1x12x8xf32>
    %37 = vector.extract_strided_slice %33 {offsets = [0, 0, 24], sizes = [1, 12, 8], strides = [1, 1, 1]} : vector<1x12x32xf32> to vector<1x12x8xf32>
    %38 = tpu.concatenate %34, %35, %36, %37 in 0 : vector<1x12x8xf32>, vector<1x12x8xf32>, vector<1x12x8xf32>, vector<1x12x8xf32> -> vector<4x12x8xf32>
    %39 = arith.truncf %38 : vector<4x12x8xf32> to vector<4x12x8xbf16>
    "tpu.trace_start"() <{level = 10 : i32, message = "btd,bsd->bts"}> : () -> ()
    %cst_19 = arith.constant dense<0.000000e+00> : vector<4x8x12xf32>
    %40 = tpu.matmul %25, %32, %cst_19 {dimension_numbers = #tpu.dot_dimension_numbers<[2], [2], [1], [1], [0, 0, 0, 1, 1, 1], [0], [0]>} : vector<4x8x8xbf16>, vector<4x12x8xbf16>, vector<4x8x12xf32> -> vector<4x8x12xf32>
    "tpu.trace_stop"() : () -> ()
    %cst_20 = arith.constant 0.353553385 : f32
    %41 = vector.broadcast %cst_20 : f32 to vector<4x8x12xf32>
    %42 = arith.mulf %40, %41 : vector<4x8x12xf32>
    %c0_21 = arith.constant 0 : index
    %c0_22 = arith.constant 0 : index
    %c0_23 = arith.constant 0 : index
    %43 = vector.load %arg3[%c0_21, %c0_22, %c0_23] : memref<1x1x12xi32, #tpu.memory_space<vmem>>, vector<1x1x12xi32>
    %44 = tpu.concatenate %43, %43, %43, %43 in 0 : vector<1x1x12xi32>, vector<1x1x12xi32>, vector<1x1x12xi32>, vector<1x1x12xi32> -> vector<4x1x12xi32>
    %c0_i32 = arith.constant 0 : i32
    %45 = vector.broadcast %c0_i32 : i32 to vector<4x1x12xi32>
    %46 = arith.cmpi sgt, %44, %45 : vector<4x1x12xi32>
    %cst_24 = arith.constant -3.40282347E+38 : f32
    %47 = vector.shape_cast %46 : vector<4x1x12xi1> to vector<4x1x12xi1>
    %48 = vector.broadcast %47 : vector<4x1x12xi1> to vector<4x8x12xi1>
    %49 = vector.broadcast %cst_24 : f32 to vector<4x8x12xf32>
    %50 = arith.select %48, %49, %42 : vector<4x8x12xi1>, vector<4x8x12xf32>
    %cst_25 = arith.constant dense<0xFF800000> : vector<4x8xf32>
    %51 = vector.multi_reduction <maximumf>, %50, %cst_25 [2] : vector<4x8x12xf32> to vector<4x8xf32>
    %52 = vector.shape_cast %51 : vector<4x8xf32> to vector<4x8x1xf32>
    %53 = vector.broadcast %52 : vector<4x8x1xf32> to vector<4x8x12xf32>
    %54 = arith.subf %50, %53 : vector<4x8x12xf32>
    %55 = math.exp %54 : vector<4x8x12xf32>
    %cst_26 = arith.constant dense<0.000000e+00> : vector<4x8xf32>
    %56 = vector.multi_reduction <add>, %55, %cst_26 [2] : vector<4x8x12xf32> to vector<4x8xf32>
    %57 = vector.shape_cast %56 : vector<4x8xf32> to vector<4x8x1xf32>
    %58 = tpu.reciprocal %57 : vector<4x8x1xf32> -> vector<4x8x1xf32>
    %59 = vector.broadcast %58 : vector<4x8x1xf32> to vector<4x8x12xf32>
    %60 = arith.mulf %55, %59 : vector<4x8x12xf32>
    %cst_27 = arith.constant 0.000000e+00 : f32
    %61 = vector.shape_cast %46 : vector<4x1x12xi1> to vector<4x1x12xi1>
    %62 = vector.broadcast %61 : vector<4x1x12xi1> to vector<4x8x12xi1>
    %63 = vector.broadcast %cst_27 : f32 to vector<4x8x12xf32>
    %64 = arith.select %62, %63, %60 : vector<4x8x12xi1>, vector<4x8x12xf32>
    %65 = arith.truncf %64 : vector<4x8x12xf32> to vector<4x8x12xbf16>
    "tpu.trace_start"() <{level = 10 : i32, message = "bts,bsd->btd"}> : () -> ()
    %cst_28 = arith.constant dense<0.000000e+00> : vector<4x8x8xf32>
    %66 = tpu.matmul %65, %39, %cst_28 {dimension_numbers = #tpu.dot_dimension_numbers<[2], [1], [1], [2], [0, 0, 0, 1, 1, 2], [0], [0]>} : vector<4x8x12xbf16>, vector<4x12x8xbf16>, vector<4x8x8xf32> -> vector<4x8x8xf32>
    "tpu.trace_stop"() : () -> ()
    %67 = vector.extract_strided_slice %66 {offsets = [0, 0, 0], sizes = [1, 8, 8], strides = [1, 1, 1]} : vector<4x8x8xf32> to vector<1x8x8xf32>
    %68 = vector.extract_strided_slice %66 {offsets = [1, 0, 0], sizes = [1, 8, 8], strides = [1, 1, 1]} : vector<4x8x8xf32> to vector<1x8x8xf32>
    %69 = vector.extract_strided_slice %66 {offsets = [2, 0, 0], sizes = [1, 8, 8], strides = [1, 1, 1]} : vector<4x8x8xf32> to vector<1x8x8xf32>
    %70 = vector.extract_strided_slice %66 {offsets = [3, 0, 0], sizes = [1, 8, 8], strides = [1, 1, 1]} : vector<4x8x8xf32> to vector<1x8x8xf32>
    %71 = tpu.concatenate %67, %68, %69, %70 in 2 : vector<1x8x8xf32>, vector<1x8x8xf32>, vector<1x8x8xf32>, vector<1x8x8xf32> -> vector<1x8x32xf32>
    %72 = vector.shape_cast %71 : vector<1x8x32xf32> to vector<8x32xf32>
    %73 = arith.truncf %72 : vector<8x32xf32> to vector<8x32xbf16>
    %c0_29 = arith.constant 0 : index
    %c0_30 = arith.constant 0 : index
    %74 = vector.load %arg10[%c0_29, %c0_30] : memref<32x32xbf16, #tpu.memory_space<vmem>>, vector<32x32xbf16>
    %cst_31 = arith.constant dense<0.000000e+00> : vector<8x32xf32>
    %75 = tpu.matmul %73, %74, %cst_31 {dimension_numbers = #tpu.dot_dimension_numbers<[1], [0], [0], [1], [0, 0, 1, 1], [], []>} : vector<8x32xbf16>, vector<32x32xbf16>, vector<8x32xf32> -> vector<8x32xf32>
    %c0_32 = arith.constant 0 : index
    %c0_33 = arith.constant 0 : index
    %76 = vector.load %arg11[%c0_32, %c0_33] : memref<1x32xf32, #tpu.memory_space<vmem>>, vector<1x32xf32>
    %77 = vector.broadcast %76 : vector<1x32xf32> to vector<8x32xf32>
    %78 = arith.addf %75, %77 : vector<8x32xf32>
    %79 = vector.shape_cast %78 : vector<8x32xf32> to vector<1x8x32xf32>
    %c0_34 = arith.constant 0 : index
    %c0_35 = arith.constant 0 : index
    %c0_36 = arith.constant 0 : index
    %80 = vector.load %arg12[%c0_34, %c0_35, %c0_36] : memref<1x8x32xf32, #tpu.memory_space<vmem>>, vector<1x8x32xf32>
    tpu.vector_store %arg12[%c0_34, %c0_35, %c0_36], %79 {strides = array<i32>} : memref<1x8x32xf32, #tpu.memory_space<vmem>>, vector<1x8x32xf32>,
    %81 = vector.shape_cast %64 : vector<4x8x12xf32> to vector<4x1x8x12xf32>
    %cst_37 = arith.constant dense<0.000000e+00> : vector<1x8x12xf32>
    %82 = vector.multi_reduction <add>, %81, %cst_37 [0] : vector<4x1x8x12xf32> to vector<1x8x12xf32>
    %cst_38 = arith.constant 2.500000e-01 : f32
    %83 = vector.broadcast %cst_38 : f32 to vector<1x8x12xf32>
    %84 = arith.mulf %82, %83 : vector<1x8x12xf32>
    %c0_39 = arith.constant 0 : index
    %c0_40 = arith.constant 0 : index
    %c0_41 = arith.constant 0 : index
    %85 = vector.load %arg13[%c0_39, %c0_40, %c0_41] : memref<1x8x12xf32, #tpu.memory_space<vmem>>, vector<1x8x12xf32>
    tpu.vector_store %arg13[%c0_39, %c0_40, %c0_41], %84 {strides = array<i32>} : memref<1x8x12xf32, #tpu.memory_space<vmem>>, vector<1x8x12xf32>,
    return
  }
  func.func @transform_0(%arg0: i32) -> (i32, i32, i32) {
    %c0_i32 = arith.constant 0 : i32
    %c0_i32_0 = arith.constant 0 : i32
    %c0_i32_1 = arith.constant 0 : i32
    return %arg0, %c0_i32, %c0_i32_0 : i32, i32, i32
  }
  func.func @transform_1(%arg0: i32) -> (i32, i32, i32) {
    %c0_i32 = arith.constant 0 : i32
    %c0_i32_0 = arith.constant 0 : i32
    %c0_i32_1 = arith.constant 0 : i32
    return %arg0, %c0_i32, %c0_i32_0 : i32, i32, i32
  }
  func.func @transform_2(%arg0: i32) -> (i32, i32, i32) {
    %c0_i32 = arith.constant 0 : i32
    %c0_i32_0 = arith.constant 0 : i32
    %c0_i32_1 = arith.constant 0 : i32
    return %arg0, %c0_i32, %c0_i32_0 : i32, i32, i32
  }
  func.func @transform_3(%arg0: i32) -> (i32, i32) {
    %c0_i32 = arith.constant 0 : i32
    %c0_i32_0 = arith.constant 0 : i32
    %c0_i32_1 = arith.constant 0 : i32
    return %c0_i32, %c0_i32_0 : i32, i32
  }
  func.func @transform_4(%arg0: i32) -> (i32, i32) {
    %c0_i32 = arith.constant 0 : i32
    %c0_i32_0 = arith.constant 0 : i32
    %c0_i32_1 = arith.constant 0 : i32
    return %c0_i32, %c0_i32_0 : i32, i32
  }
  func.func @transform_5(%arg0: i32) -> (i32, i32) {
    %c0_i32 = arith.constant 0 : i32
    %c0_i32_0 = arith.constant 0 : i32
    %c0_i32_1 = arith.constant 0 : i32
    return %c0_i32, %c0_i32_0 : i32, i32
  }
  func.func @transform_6(%arg0: i32) -> (i32, i32) {
    %c0_i32 = arith.constant 0 : i32
    %c0_i32_0 = arith.constant 0 : i32
    %c0_i32_1 = arith.constant 0 : i32
    return %c0_i32, %c0_i32_0 : i32, i32
  }
  func.func @transform_7(%arg0: i32) -> (i32, i32) {
    %c0_i32 = arith.constant 0 : i32
    %c0_i32_0 = arith.constant 0 : i32
    %c0_i32_1 = arith.constant 0 : i32
    return %c0_i32, %c0_i32_0 : i32, i32
  }
  func.func @transform_8(%arg0: i32) -> (i32, i32) {
    %c0_i32 = arith.constant 0 : i32
    %c0_i32_0 = arith.constant 0 : i32
    %c0_i32_1 = arith.constant 0 : i32
    return %c0_i32, %c0_i32_0 : i32, i32
  }
  func.func @transform_9(%arg0: i32) -> (i32, i32) {
    %c0_i32 = arith.constant 0 : i32
    %c0_i32_0 = arith.constant 0 : i32
    %c0_i32_1 = arith.constant 0 : i32
    return %c0_i32, %c0_i32_0 : i32, i32
  }
  func.func @transform_10(%arg0: i32) -> (i32, i32) {
    %c0_i32 = arith.constant 0 : i32
    %c0_i32_0 = arith.constant 0 : i32
    %c0_i32_1 = arith.constant 0 : i32
    return %c0_i32, %c0_i32_0 : i32, i32
  }
  func.func @transform_11(%arg0: i32) -> (i32, i32, i32) {
    %c0_i32 = arith.constant 0 : i32
    %c0_i32_0 = arith.constant 0 : i32
    %c0_i32_1 = arith.constant 0 : i32
    return %arg0, %c0_i32, %c0_i32_0 : i32, i32, i32
  }
  func.func @transform_12(%arg0: i32) -> (i32, i32, i32) {
    %c0_i32 = arith.constant 0 : i32
    %c0_i32_0 = arith.constant 0 : i32
    %c0_i32_1 = arith.constant 0 : i32
    return %arg0, %c0_i32, %c0_i32_0 : i32, i32, i32
  }
}

</mosaic_0001>

<llo_original>
// kernel: tpu_custom_call.1
$region0: #{tpu_custom_call.1}
  #allocation0 [shape = 'u32[]', space=smem, size = 0x4, offset = 0x4, fixed_abs, tag = 'smem constant byte address 0x4 - core index']
  #allocation1 [shape = 'u32[72,128]{1,0:T(1,128)}', space=vmem, size = 0x9000, scoped, tag = 'internal scratch']
  %s0 = inlined_call_operand.hbm [shape: bf16[2,8,32], index: 0, kind: input, shape index: {}]
  %s1 = inlined_call_operand.vmem [shape: bf16[2,12,24], index: 1, kind: input, shape index: {}]
  %s2 = inlined_call_operand.hbm [shape: s32[2,1,12], index: 2, kind: input, shape index: {}]
  %s3 = inlined_call_operand.vmem [shape: bf16[32,32], index: 3, kind: input, shape index: {}]
  %s4 = inlined_call_operand.hbm [shape: f32[1,32], index: 4, kind: input, shape index: {}]
  %s5 = inlined_call_operand.hbm [shape: bf16[24,32], index: 5, kind: input, shape index: {}]
  %s6 = inlined_call_operand.vmem [shape: f32[1,32], index: 6, kind: input, shape index: {}]
  %s7 = inlined_call_operand.hbm [shape: bf16[24,32], index: 7, kind: input, shape index: {}]
  %s8 = inlined_call_operand.vmem [shape: f32[1,32], index: 8, kind: input, shape index: {}]
  %s9 = inlined_call_operand.vmem [shape: bf16[32,32], index: 9, kind: input, shape index: {}]
  %s10 = inlined_call_operand.vmem [shape: f32[1,32], index: 10, kind: input, shape index: {}]
  %s11 = inlined_call_operand.hbm [shape: f32[2,8,32], index: 11, kind: output, shape index: {0}]
  %s12 = inlined_call_operand.hbm [shape: f32[2,8,12], index: 12, kind: output, shape index: {1}]
  %13 = xla_tuple %s11, %s12
  %s14 = sld [smem:[#allocation0]]
  $region105: #{tpu_custom_call.1} parent=0
    _
  %s16 = ssub.s32 1, %s14
  %s17 = scalar_select 0, %s16, %s14
  $region1: #{tpu_custom_call.1} parent=0
    #allocation2 [shape = 'u8[4096]{0}', space=vmem, size = 0x1000, scoped, tag = 'input window, operand 0']
    #allocation3 [shape = 's32[2]{0}', space=sflag, size = 0x8, scoped, tag = 'scoped memory for tpu_custom_call.1']
    #allocation4 [shape = 's32[2]{0}', space=sflag, size = 0x8, scoped, tag = 'scoped memory for tpu_custom_call.1']
    #allocation5 [shape = 'u8[1024]{0}', space=vmem, size = 0x400, scoped, tag = 'input window, operand 2']
    #allocation6 [shape = 's32[2]{0}', space=sflag, size = 0x8, scoped, tag = 'scoped memory for tpu_custom_call.1']
    #allocation7 [shape = 'u8[512]{0}', space=vmem, size = 0x400, scoped, tag = 'input window, operand 4, single buffered']
    #allocation8 [shape = 'u8[6144]{0}', space=vmem, size = 0x1800, scoped, tag = 'input window, operand 5, single buffered']
    #allocation9 [shape = 's32[1]{0}', space=sflag, size = 0x4, scoped, tag = 'scoped memory for tpu_custom_call.1']
    #allocation10 [shape = 'u8[6144]{0}', space=vmem, size = 0x1800, scoped, tag = 'input window, operand 7, single buffered']
    #allocation11 [shape = 'u8[8192]{0}', space=vmem, size = 0x2000, scoped, tag = 'output window, operand 0']
    #allocation12 [shape = 'u8[8192]{0}', space=vmem, size = 0x2000, scoped, tag = 'output window, operand 1']
    #allocation13 [shape = 's32[2]{0}', space=sflag, size = 0x8, scoped, tag = 'scoped memory for tpu_custom_call.1']
    %18 = vsyncpa [#allocation3], 0
    %s19 = scalar_lea.sflag [#allocation3], 1
    %20 = vsyncpa %s19, 0
    %21 = vsyncpa [#allocation6], 0
    %s22 = scalar_lea.sflag [#allocation6], 1
    %23 = vsyncpa %s22, 0
    %24 = vsyncpa [#allocation9], 0
    %25 = vsyncpa [#allocation4], 0
    %s26 = scalar_lea.sflag [#allocation4], 1
    %27 = vsyncpa %s26, 0
    %28 = vsyncpa [#allocation13], 0
    %s29 = scalar_lea.sflag [#allocation13], 1
    %30 = vsyncpa %s29, 0
    loop: start=0, step=1, limit=4
    $region2: #{tpu_custom_call.1} parent=1 // loop_pre_header
      _
    $region3: #{tpu_custom_call.1} parent=1 // loop_header
      %s32 = sphi 0, %s36
      %p33 = scmp.ge.s32.totalorder %s32, 4
      %s42 = sphi 0, %s44
      %s45 = sphi 0, %s42
      %s46 = sphi 0, %s45
      %s62 = sphi 0, %s46
      %s68 = sphi 0, %s70
      %s71 = sphi 0, %s68
      %s72 = sphi 0, %s71
      %s88 = sphi 0, %s72
      %s94 = sphi 0, %s96
      %s97 = sphi 0, %s94
      %s98 = sphi 0, %s97
      %s114 = sphi 0, %s98
      %s118 = sphi 0, %s118
      %s120 = sphi 0, %s118
      %s121 = sphi 0, %s120
      %s135 = sphi 0, %s121
      %s139 = sphi 0, %s139
      %s141 = sphi 0, %s139
      %s142 = sphi 0, %s141
      %s156 = sphi 0, %s142
      %s160 = sphi 0, %s160
      %s162 = sphi 0, %s160
      %s163 = sphi 0, %s162
      %s177 = sphi 0, %s163
      %s181 = sphi 0, %s181
      %s183 = sphi 0, %s181
      %s184 = sphi 0, %s183
      %s198 = sphi 0, %s184
      %s202 = sphi 0, %s202
      %s204 = sphi 0, %s202
      %s205 = sphi 0, %s204
      %s219 = sphi 0, %s205
      %s223 = sphi 0, %s223
      %s225 = sphi 0, %s223
      %s226 = sphi 0, %s225
      %s240 = sphi 0, %s226
      %s244 = sphi 0, %s244
      %s246 = sphi 0, %s244
      %s247 = sphi 0, %s246
      %s261 = sphi 0, %s247
      %s265 = sphi 0, %s265
      %s267 = sphi 0, %s265
      %s268 = sphi 0, %s267
      %s282 = sphi 0, %s268
      %s288 = sphi 0, %s290
      %s291 = sphi 0, %s288
      %s292 = sphi 0, %s291
      %s308 = sphi 0, %s292
      %s314 = sphi 0, %s316
      %s317 = sphi 0, %s314
      %s318 = sphi 0, %s317
      %s334 = sphi 0, %s318
    $region4: #{tpu_custom_call.1} parent=1 // loop_header_branch
      %35 = sbr.rel (%p33) target = $region8
    $region5: #{tpu_custom_call.1} parent=1 // loop_body
      %s37 = ssub.s32 %s32, 1
      %s38 = ssub.s32 %s32, 2
      %s39 = sadd.s32 %s32, 1
      %s40 = ssub.s32 %s32, %s39
      %p41 = scmp.eq.s32.totalorder %s40, 0
      %s43 = sadd.s32 %s42, 1
      %s44 = scalar_select %p41, %s42, %s43
      %p47 = pneg %p41
      %p48 = scmp.eq.s32.totalorder %s32, 1
      %p49 = por %p47, %p48
      %p50 = scmp.ne.s32.totalorder %s42, %s45
      %p51 = scmp.eq.s32.totalorder %s32, 0
      %p52 = por %p50, %p51
      %p53 = scmp.ne.s32.totalorder %s42, %s45
      %p54 = scmp.eq.s32.totalorder %s37, 1
      %p55 = por %p53, %p54
      %p56 = scmp.ne.s32.totalorder %s45, %s46
      %p57 = scmp.eq.s32.totalorder %s37, 0
      %p58 = por %p56, %p57
      %p59 = scmp.ne.s32.totalorder %s45, %s46
      %p60 = scmp.eq.s32.totalorder %s38, 1
      %p61 = por %p59, %p60
      %p63 = scmp.ne.s32.totalorder %s46, %s62
      %p64 = scmp.eq.s32.totalorder %s38, 0
      %p65 = por %p63, %p64
      %s66 = ssub.s32 %s32, %s39
      %p67 = scmp.eq.s32.totalorder %s66, 0
      %s69 = sadd.s32 %s68, 1
      %s70 = scalar_select %p67, %s68, %s69
      %p73 = pneg %p67
      %p74 = scmp.eq.s32.totalorder %s32, 1
      %p75 = por %p73, %p74
      %p76 = scmp.ne.s32.totalorder %s68, %s71
      %p77 = scmp.eq.s32.totalorder %s32, 0
      %p78 = por %p76, %p77
      %p79 = scmp.ne.s32.totalorder %s68, %s71
      %p80 = scmp.eq.s32.totalorder %s37, 1
      %p81 = por %p79, %p80
      %p82 = scmp.ne.s32.totalorder %s71, %s72
      %p83 = scmp.eq.s32.totalorder %s37, 0
      %p84 = por %p82, %p83
      %p85 = scmp.ne.s32.totalorder %s71, %s72
      %p86 = scmp.eq.s32.totalorder %s38, 1
      %p87 = por %p85, %p86
      %p89 = scmp.ne.s32.totalorder %s72, %s88
      %p90 = scmp.eq.s32.totalorder %s38, 0
      %p91 = por %p89, %p90
      %s92 = ssub.s32 %s32, %s39
      %p93 = scmp.eq.s32.totalorder %s92, 0
      %s95 = sadd.s32 %s94, 1
      %s96 = scalar_select %p93, %s94, %s95
      %p99 = pneg %p93
      %p100 = scmp.eq.s32.totalorder %s32, 1
      %p101 = por %p99, %p100
      %p102 = scmp.ne.s32.totalorder %s94, %s97
      %p103 = scmp.eq.s32.totalorder %s32, 0
      %p104 = por %p102, %p103
      %p105 = scmp.ne.s32.totalorder %s94, %s97
      %p106 = scmp.eq.s32.totalorder %s37, 1
      %p107 = por %p105, %p106
      %p108 = scmp.ne.s32.totalorder %s97, %s98
      %p109 = scmp.eq.s32.totalorder %s37, 0
      %p110 = por %p108, %p109
      %p111 = scmp.ne.s32.totalorder %s97, %s98
      %p112 = scmp.eq.s32.totalorder %s38, 1
      %p113 = por %p111, %p112
      %p115 = scmp.ne.s32.totalorder %s98, %s114
      %p116 = scmp.eq.s32.totalorder %s38, 0
      %p117 = por %p115, %p116
      %s119 = sadd.s32 %s118, 1
      %p122 = scmp.eq.s32.totalorder %s32, 1
      %p123 = scmp.ne.s32.totalorder %s118, %s120
      %p124 = scmp.eq.s32.totalorder %s32, 0
      %p125 = por %p123, %p124
      %p126 = scmp.ne.s32.totalorder %s118, %s120
      %p127 = scmp.eq.s32.totalorder %s37, 1
      %p128 = por %p126, %p127
      %p129 = scmp.ne.s32.totalorder %s120, %s121
      %p130 = scmp.eq.s32.totalorder %s37, 0
      %p131 = por %p129, %p130
      %p132 = scmp.ne.s32.totalorder %s120, %s121
      %p133 = scmp.eq.s32.totalorder %s38, 1
      %p134 = por %p132, %p133
      %p136 = scmp.ne.s32.totalorder %s121, %s135
      %p137 = scmp.eq.s32.totalorder %s38, 0
      %p138 = por %p136, %p137
      %s140 = sadd.s32 %s139, 1
      %p143 = scmp.eq.s32.totalorder %s32, 1
      %p144 = scmp.ne.s32.totalorder %s139, %s141
      %p145 = scmp.eq.s32.totalorder %s32, 0
      %p146 = por %p144, %p145
      %p147 = scmp.ne.s32.totalorder %s139, %s141
      %p148 = scmp.eq.s32.totalorder %s37, 1
      %p149 = por %p147, %p148
      %p150 = scmp.ne.s32.totalorder %s141, %s142
      %p151 = scmp.eq.s32.totalorder %s37, 0
      %p152 = por %p150, %p151
      %p153 = scmp.ne.s32.totalorder %s141, %s142
      %p154 = scmp.eq.s32.totalorder %s38, 1
      %p155 = por %p153, %p154
      %p157 = scmp.ne.s32.totalorder %s142, %s156
      %p158 = scmp.eq.s32.totalorder %s38, 0
      %p159 = por %p157, %p158
      %s161 = sadd.s32 %s160, 1
      %p164 = scmp.eq.s32.totalorder %s32, 1
      %p165 = scmp.ne.s32.totalorder %s160, %s162
      %p166 = scmp.eq.s32.totalorder %s32, 0
      %p167 = por %p165, %p166
      %p168 = scmp.ne.s32.totalorder %s160, %s162
      %p169 = scmp.eq.s32.totalorder %s37, 1
      %p170 = por %p168, %p169
      %p171 = scmp.ne.s32.totalorder %s162, %s163
      %p172 = scmp.eq.s32.totalorder %s37, 0
      %p173 = por %p171, %p172
      %p174 = scmp.ne.s32.totalorder %s162, %s163
      %p175 = scmp.eq.s32.totalorder %s38, 1
      %p176 = por %p174, %p175
      %p178 = scmp.ne.s32.totalorder %s163, %s177
      %p179 = scmp.eq.s32.totalorder %s38, 0
      %p180 = por %p178, %p179
      %s182 = sadd.s32 %s181, 1
      %p185 = scmp.eq.s32.totalorder %s32, 1
      %p186 = scmp.ne.s32.totalorder %s181, %s183
      %p187 = scmp.eq.s32.totalorder %s32, 0
      %p188 = por %p186, %p187
      %p189 = scmp.ne.s32.totalorder %s181, %s183
      %p190 = scmp.eq.s32.totalorder %s37, 1
      %p191 = por %p189, %p190
      %p192 = scmp.ne.s32.totalorder %s183, %s184
      %p193 = scmp.eq.s32.totalorder %s37, 0
      %p194 = por %p192, %p193
      %p195 = scmp.ne.s32.totalorder %s183, %s184
      %p196 = scmp.eq.s32.totalorder %s38, 1
      %p197 = por %p195, %p196
      %p199 = scmp.ne.s32.totalorder %s184, %s198
      %p200 = scmp.eq.s32.totalorder %s38, 0
      %p201 = por %p199, %p200
      %s203 = sadd.s32 %s202, 1
      %p206 = scmp.eq.s32.totalorder %s32, 1
      %p207 = scmp.ne.s32.totalorder %s202, %s204
      %p208 = scmp.eq.s32.totalorder %s32, 0
      %p209 = por %p207, %p208
      %p210 = scmp.ne.s32.totalorder %s202, %s204
      %p211 = scmp.eq.s32.totalorder %s37, 1
      %p212 = por %p210, %p211
      %p213 = scmp.ne.s32.totalorder %s204, %s205
      %p214 = scmp.eq.s32.totalorder %s37, 0
      %p215 = por %p213, %p214
      %p216 = scmp.ne.s32.totalorder %s204, %s205
      %p217 = scmp.eq.s32.totalorder %s38, 1
      %p218 = por %p216, %p217
      %p220 = scmp.ne.s32.totalorder %s205, %s219
      %p221 = scmp.eq.s32.totalorder %s38, 0
      %p222 = por %p220, %p221
      %s224 = sadd.s32 %s223, 1
      %p227 = scmp.eq.s32.totalorder %s32, 1
      %p228 = scmp.ne.s32.totalorder %s223, %s225
      %p229 = scmp.eq.s32.totalorder %s32, 0
      %p230 = por %p228, %p229
      %p231 = scmp.ne.s32.totalorder %s223, %s225
      %p232 = scmp.eq.s32.totalorder %s37, 1
      %p233 = por %p231, %p232
      %p234 = scmp.ne.s32.totalorder %s225, %s226
      %p235 = scmp.eq.s32.totalorder %s37, 0
      %p236 = por %p234, %p235
      %p237 = scmp.ne.s32.totalorder %s225, %s226
      %p238 = scmp.eq.s32.totalorder %s38, 1
      %p239 = por %p237, %p238
      %p241 = scmp.ne.s32.totalorder %s226, %s240
      %p242 = scmp.eq.s32.totalorder %s38, 0
      %p243 = por %p241, %p242
      %s245 = sadd.s32 %s244, 1
      %p248 = scmp.eq.s32.totalorder %s32, 1
      %p249 = scmp.ne.s32.totalorder %s244, %s246
      %p250 = scmp.eq.s32.totalorder %s32, 0
      %p251 = por %p249, %p250
      %p252 = scmp.ne.s32.totalorder %s244, %s246
      %p253 = scmp.eq.s32.totalorder %s37, 1
      %p254 = por %p252, %p253
      %p255 = scmp.ne.s32.totalorder %s246, %s247
      %p256 = scmp.eq.s32.totalorder %s37, 0
      %p257 = por %p255, %p256
      %p258 = scmp.ne.s32.totalorder %s246, %s247
      %p259 = scmp.eq.s32.totalorder %s38, 1
      %p260 = por %p258, %p259
      %p262 = scmp.ne.s32.totalorder %s247, %s261
      %p263 = scmp.eq.s32.totalorder %s38, 0
      %p264 = por %p262, %p263
      %s266 = sadd.s32 %s265, 1
      %p269 = scmp.eq.s32.totalorder %s32, 1
      %p270 = scmp.ne.s32.totalorder %s265, %s267
      %p271 = scmp.eq.s32.totalorder %s32, 0
      %p272 = por %p270, %p271
      %p273 = scmp.ne.s32.totalorder %s265, %s267
      %p274 = scmp.eq.s32.totalorder %s37, 1
      %p275 = por %p273, %p274
      %p276 = scmp.ne.s32.totalorder %s267, %s268
      %p277 = scmp.eq.s32.totalorder %s37, 0
      %p278 = por %p276, %p277
      %p279 = scmp.ne.s32.totalorder %s267, %s268
      %p280 = scmp.eq.s32.totalorder %s38, 1
      %p281 = por %p279, %p280
      %p283 = scmp.ne.s32.totalorder %s268, %s282
      %p284 = scmp.eq.s32.totalorder %s38, 0
      %p285 = por %p283, %p284
      %s286 = ssub.s32 %s32, %s39
      %p287 = scmp.eq.s32.totalorder %s286, 0
      %s289 = sadd.s32 %s288, 1
      %s290 = scalar_select %p287, %s288, %s289
      %p293 = pneg %p287
      %p294 = scmp.eq.s32.totalorder %s32, 1
      %p295 = por %p293, %p294
      %p296 = scmp.ne.s32.totalorder %s288, %s291
      %p297 = scmp.eq.s32.totalorder %s32, 0
      %p298 = por %p296, %p297
      %p299 = scmp.ne.s32.totalorder %s288, %s291
      %p300 = scmp.eq.s32.totalorder %s37, 1
      %p301 = por %p299, %p300
      %p302 = scmp.ne.s32.totalorder %s291, %s292
      %p303 = scmp.eq.s32.totalorder %s37, 0
      %p304 = por %p302, %p303
      %p305 = scmp.ne.s32.totalorder %s291, %s292
      %p306 = scmp.eq.s32.totalorder %s38, 1
      %p307 = por %p305, %p306
      %p309 = scmp.ne.s32.totalorder %s292, %s308
      %p310 = scmp.eq.s32.totalorder %s38, 0
      %p311 = por %p309, %p310
      %s312 = ssub.s32 %s32, %s39
      %p313 = scmp.eq.s32.totalorder %s312, 0
      %s315 = sadd.s32 %s314, 1
      %s316 = scalar_select %p313, %s314, %s315
      %p319 = pneg %p313
      %p320 = scmp.eq.s32.totalorder %s32, 1
      %p321 = por %p319, %p320
      %p322 = scmp.ne.s32.totalorder %s314, %s317
      %p323 = scmp.eq.s32.totalorder %s32, 0
      %p324 = por %p322, %p323
      %p325 = scmp.ne.s32.totalorder %s314, %s317
      %p326 = scmp.eq.s32.totalorder %s37, 1
      %p327 = por %p325, %p326
      %p328 = scmp.ne.s32.totalorder %s317, %s318
      %p329 = scmp.eq.s32.totalorder %s37, 0
      %p330 = por %p328, %p329
      %p331 = scmp.ne.s32.totalorder %s317, %s318
      %p332 = scmp.eq.s32.totalorder %s38, 1
      %p333 = por %p331, %p332
      %p335 = scmp.ne.s32.totalorder %s318, %s334
      %p336 = scmp.eq.s32.totalorder %s38, 0
      %p337 = por %p335, %p336
      %p338 = scmp.le.s32.totalorder 1, %s32
      %p339 = scmp.lt.s32.totalorder %s32, 3
      %p340 = pnand %p338, %p339
      %p341 = pneg %p340
      // Predicated region
      $region9: #{tpu_custom_call.1} parent=5 // pred_check
        _
      $region10: #{tpu_custom_call.1} parent=5 // pred_check_branch
        %343 = sbr.rel (%p340) target = $region12
      $region11: #{tpu_custom_call.1} parent=5 // pred_region
        %s344 = ssub.s32 %s32, 1
        // Predicated region
        $region13: #{tpu_custom_call.1} parent=11 // pred_check
          %p345 = pneg %p131
        $region14: #{tpu_custom_call.1} parent=11 // pred_check_branch
          %347 = sbr.rel (%p345) target = $region16
        $region15: #{tpu_custom_call.1} parent=11 // pred_region
          _
        $region16: #{tpu_custom_call.1} parent=11 // pred_fallthru
          _
        // Predicated region
        $region17: #{tpu_custom_call.1} parent=11 // pred_check
          %p348 = pneg %p152
        $region18: #{tpu_custom_call.1} parent=11 // pred_check_branch
          %350 = sbr.rel (%p348) target = $region20
        $region19: #{tpu_custom_call.1} parent=11 // pred_region
          %352 = vsyncadd [#allocation6], 0
          %s354 = sshll.u32 %s4, 4
          %s355 = int_to_ptr.hbm [resolvable:$true] %s354
          %s356 = sshll.u32 [#allocation7], 4
          %s357 = int_to_ptr.vmem [resolvable:$true] %s356
          %359 = dma.hbm_to_vmem [thread:$0]  %s355, 16, %s357, [#allocation6]
        $region20: #{tpu_custom_call.1} parent=11 // pred_fallthru
          _
        // Predicated region
        $region21: #{tpu_custom_call.1} parent=11 // pred_check
          %p360 = pneg %p173
        $region22: #{tpu_custom_call.1} parent=11 // pred_check_branch
          %362 = sbr.rel (%p360) target = $region24
        $region23: #{tpu_custom_call.1} parent=11 // pred_region
          %364 = vsyncadd [#allocation9], 0
          %s365 = sshll.u32 %s5, 4
          %s366 = int_to_ptr.hbm [resolvable:$true] %s365
          %s367 = sshll.u32 [#allocation8], 4
          %s368 = int_to_ptr.vmem [resolvable:$true] %s367
          %373 = dma.hbm_to_vmem [thread:$0]  %s366, 192, %s368, [#allocation9], 64, 64, 4
        $region24: #{tpu_custom_call.1} parent=11 // pred_fallthru
          _
        // Predicated region
        $region25: #{tpu_custom_call.1} parent=11 // pred_check
          %p374 = pneg %p194
        $region26: #{tpu_custom_call.1} parent=11 // pred_check_branch
          %376 = sbr.rel (%p374) target = $region28
        $region27: #{tpu_custom_call.1} parent=11 // pred_region
          _
        $region28: #{tpu_custom_call.1} parent=11 // pred_fallthru
          _
        // Predicated region
        $region29: #{tpu_custom_call.1} parent=11 // pred_check
          %p377 = pneg %p215
        $region30: #{tpu_custom_call.1} parent=11 // pred_check_branch
          %379 = sbr.rel (%p377) target = $region32
        $region31: #{tpu_custom_call.1} parent=11 // pred_region
          %381 = vsyncadd [#allocation9], 0
          %s382 = sshll.u32 %s7, 4
          %s383 = int_to_ptr.hbm [resolvable:$true] %s382
          %s384 = sshll.u32 [#allocation10], 4
          %s385 = int_to_ptr.vmem [resolvable:$true] %s384
          %390 = dma.hbm_to_vmem [thread:$0]  %s383, 192, %s385, [#allocation9], 64, 64, 4
        $region32: #{tpu_custom_call.1} parent=11 // pred_fallthru
          _
        // Predicated region
        $region33: #{tpu_custom_call.1} parent=11 // pred_check
          %p391 = pneg %p236
        $region34: #{tpu_custom_call.1} parent=11 // pred_check_branch
          %393 = sbr.rel (%p391) target = $region36
        $region35: #{tpu_custom_call.1} parent=11 // pred_region
          _
        $region36: #{tpu_custom_call.1} parent=11 // pred_fallthru
          _
        // Predicated region
        $region37: #{tpu_custom_call.1} parent=11 // pred_check
          %p394 = pneg %p257
        $region38: #{tpu_custom_call.1} parent=11 // pred_check_branch
          %396 = sbr.rel (%p394) target = $region40
        $region39: #{tpu_custom_call.1} parent=11 // pred_region
          _
        $region40: #{tpu_custom_call.1} parent=11 // pred_fallthru
          _
        // Predicated region
        $region41: #{tpu_custom_call.1} parent=11 // pred_check
          %p397 = pneg %p278
        $region42: #{tpu_custom_call.1} parent=11 // pred_check_branch
          %399 = sbr.rel (%p397) target = $region44
        $region43: #{tpu_custom_call.1} parent=11 // pred_region
          _
        $region44: #{tpu_custom_call.1} parent=11 // pred_fallthru
          _
      $region12: #{tpu_custom_call.1} parent=5 // pred_fallthru
        _
      %p400 = scmp.lt.s32.totalorder %s32, 2
      // Predicated region
      $region45: #{tpu_custom_call.1} parent=5 // pred_check
        %p401 = pneg %p400
      $region46: #{tpu_custom_call.1} parent=5 // pred_check_branch
        %403 = sbr.rel (%p401) target = $region48
      $region47: #{tpu_custom_call.1} parent=5 // pred_region
        // Predicated region
        $region49: #{tpu_custom_call.1} parent=47 // pred_check
          %p404 = pneg %p52
        $region50: #{tpu_custom_call.1} parent=47 // pred_check_branch
          %406 = sbr.rel (%p404) target = $region52
        $region51: #{tpu_custom_call.1} parent=47 // pred_region
          %s407 = sand.u32 %s42, 1
          %s408 = scalar_lea.sflag [#allocation3], %s407
          %s409 = sand.u32 %s42, 1
          %s410 = smul.addr %s409, 4
          %s411 = scalar_lea.vmem [#allocation2], %s410
          %413 = vsyncadd %s408, 0
          %s414 = smul.addr %s32, 4
          %s415 = scalar_lea.hbm %s0, %s414
          %s417 = sshll.u32 %s415, 4
          %s418 = int_to_ptr.hbm [resolvable:$true] %s417
          %s419 = sshll.u32 %s411, 4
          %s420 = int_to_ptr.vmem [resolvable:$true] %s419
          %422 = dma.hbm_to_vmem [thread:$0]  %s418, 64, %s420, %s408
        $region52: #{tpu_custom_call.1} parent=47 // pred_fallthru
          _
        // Predicated region
        $region53: #{tpu_custom_call.1} parent=47 // pred_check
          %p423 = pneg %p78
        $region54: #{tpu_custom_call.1} parent=47 // pred_check_branch
          %425 = sbr.rel (%p423) target = $region56
        $region55: #{tpu_custom_call.1} parent=47 // pred_region
          %p426 = scmp.lt.s32.totalorder %s32, 1
          %s427 = scalar_select %p426, %s32, 1
          %s428 = smul.addr %s427, 2
          %s429 = smul.addr %s428, 4
          %s430 = scalar_lea.vmem %s1, %s429
        $region56: #{tpu_custom_call.1} parent=47 // pred_fallthru
          _
        // Predicated region
        $region57: #{tpu_custom_call.1} parent=47 // pred_check
          %p431 = pneg %p104
        $region58: #{tpu_custom_call.1} parent=47 // pred_check_branch
          %433 = sbr.rel (%p431) target = $region60
        $region59: #{tpu_custom_call.1} parent=47 // pred_region
          %s434 = sand.u32 %s32, 1
          %s435 = scalar_lea.sflag [#allocation6], %s434
          %s436 = sand.u32 %s94, 1
          %s437 = scalar_lea.vmem [#allocation5], %s436
          %439 = vsyncadd %s435, 0
          %s440 = scalar_lea.hbm %s2, %s32
          %s442 = sshll.u32 %s440, 4
          %s443 = int_to_ptr.hbm [resolvable:$true] %s442
          %s444 = sshll.u32 %s437, 4
          %s445 = int_to_ptr.vmem [resolvable:$true] %s444
          %447 = dma.hbm_to_vmem [thread:$0]  %s443, 16, %s445, %s435
        $region60: #{tpu_custom_call.1} parent=47 // pred_fallthru
          _
      $region48: #{tpu_custom_call.1} parent=5 // pred_fallthru
        _
      %p448 = scmp.le.s32.totalorder 1, %s32
      %p449 = scmp.lt.s32.totalorder %s32, 3
      %p450 = pnand %p448, %p449
      %p451 = pneg %p450
      // Predicated region
      $region61: #{tpu_custom_call.1} parent=5 // pred_check
        _
      $region62: #{tpu_custom_call.1} parent=5 // pred_check_branch
        %453 = sbr.rel (%p450) target = $region64
      $region63: #{tpu_custom_call.1} parent=5 // pred_region
        %s454 = ssub.s32 %s32, 1
        %s455 = sand.u32 %s45, 1
        %s456 = scalar_lea.sflag [#allocation3], %s455
        %s457 = sand.u32 %s45, 1
        %s458 = smul.addr %s457, 4
        %s459 = scalar_lea.vmem [#allocation2], %s458
        // Predicated region
        $region65: #{tpu_custom_call.1} parent=63 // pred_check
          %p460 = pneg %p58
        $region66: #{tpu_custom_call.1} parent=63 // pred_check_branch
          %462 = sbr.rel (%p460) target = $region68
        $region67: #{tpu_custom_call.1} parent=63 // pred_region
          %464 = dma.done %s456, 64
        $region68: #{tpu_custom_call.1} parent=63 // pred_fallthru
          _
        %s465 = sand.u32 %s37, 1
        %s466 = scalar_lea.sflag [#allocation6], %s465
        %s467 = sand.u32 %s97, 1
        %s468 = scalar_lea.vmem [#allocation5], %s467
        // Predicated region
        $region69: #{tpu_custom_call.1} parent=63 // pred_check
          %p469 = pneg %p110
        $region70: #{tpu_custom_call.1} parent=63 // pred_check_branch
          %471 = sbr.rel (%p469) target = $region72
        $region71: #{tpu_custom_call.1} parent=63 // pred_region
          %473 = dma.done %s466, 16
        $region72: #{tpu_custom_call.1} parent=63 // pred_fallthru
          _
        // Predicated region
        $region73: #{tpu_custom_call.1} parent=63 // pred_check
          %p474 = pneg %p152
        $region74: #{tpu_custom_call.1} parent=63 // pred_check_branch
          %476 = sbr.rel (%p474) target = $region76
        $region75: #{tpu_custom_call.1} parent=63 // pred_region
          %478 = dma.done [#allocation6], 16
        $region76: #{tpu_custom_call.1} parent=63 // pred_fallthru
          _
        // Predicated region
        $region77: #{tpu_custom_call.1} parent=63 // pred_check
          %p479 = pneg %p173
        $region78: #{tpu_custom_call.1} parent=63 // pred_check_branch
          %481 = sbr.rel (%p479) target = $region80
        $region79: #{tpu_custom_call.1} parent=63 // pred_region
          %483 = dma.done [#allocation9], 192
        $region80: #{tpu_custom_call.1} parent=63 // pred_fallthru
          _
        // Predicated region
        $region81: #{tpu_custom_call.1} parent=63 // pred_check
          %p484 = pneg %p215
        $region82: #{tpu_custom_call.1} parent=63 // pred_check_branch
          %486 = sbr.rel (%p484) target = $region84
        $region83: #{tpu_custom_call.1} parent=63 // pred_region
          %488 = dma.done [#allocation9], 192
        $region84: #{tpu_custom_call.1} parent=63 // pred_fallthru
          _
        %s489 = sand.u32 %s45, 1
        %s490 = scalar_lea.sflag [#allocation3], %s489
        %s491 = sand.u32 %s45, 1
        %s492 = smul.addr %s491, 4
        %s493 = scalar_lea.vmem [#allocation2], %s492
        %p494 = pneg %p58
        %p495 = pneg %p55
        %p496 = scmp.lt.s32.totalorder %s37, 1
        %s497 = scalar_select %p496, %s37, 1
        %s498 = smul.addr %s497, 2
        %s499 = smul.addr %s498, 4
        %s500 = scalar_lea.vmem %s1, %s499
        %p501 = pneg %p84
        %p502 = pneg %p81
        %s503 = sand.u32 %s37, 1
        %s504 = scalar_lea.sflag [#allocation6], %s503
        %s505 = sand.u32 %s97, 1
        %s506 = scalar_lea.vmem [#allocation5], %s505
        %p507 = pneg %p110
        %p508 = pneg %p107
        %p509 = pneg %p131
        %p510 = pneg %p128
        %p511 = pneg %p152
        %p512 = pneg %p149
        %p513 = pneg %p173
        %p514 = pneg %p170
        %p515 = pneg %p194
        %p516 = pneg %p191
        %p517 = pneg %p215
        %p518 = pneg %p212
        %p519 = pneg %p236
        %p520 = pneg %p233
        %p521 = pneg %p257
        %p522 = pneg %p254
        %p523 = pneg %p278
        %p524 = pneg %p275
        %p525 = pneg %p304
        %p526 = pneg %p301
        %s527 = sand.u32 %s291, 1
        %s528 = scalar_lea.sflag [#allocation4], %s527
        %s529 = sand.u32 %s291, 1
        %s530 = smul.addr %s529, 8
        %s531 = scalar_lea.vmem [#allocation11], %s530
        %p532 = pneg %p330
        %p533 = pneg %p327
        %s534 = sand.u32 %s317, 1
        %s535 = scalar_lea.sflag [#allocation13], %s534
        %s536 = sand.u32 %s317, 1
        %s537 = smul.addr %s536, 8
        %s538 = scalar_lea.vmem [#allocation12], %s537
        %p539 = scmp.lt.s32.totalorder %s37, 1
        %s540 = scalar_select %p539, %s37, 1
        %s541 = smul.addr %s540, 2
        %s542 = smul.addr %s541, 4
        %s543 = scalar_lea.vmem %s1, %s542
        %v545 = vld [vmem:[%s459] sm:$0xf]
        %v546 = vld [vmem:[%s543] sm:$0xf]
        %v547 = vld [vmem:[%s543 + $0x4] sm:$0x3]
        %v548 = vld [vmem:[%s3] sm:$0xf]
        %v549 = vld [vmem:[%s3 + $0x4] sm:$0xf]
        %v550 = vld [vmem:[%s3 + $0x8] sm:$0xf]
        %v551 = vld [vmem:[%s3 + $0xc] sm:$0xf]
        %v552 = vld [vmem:[#allocation7] sm:$0x1]
        %v554 = vperm.slane %v552, 0
        %v560 = vunpack.c.l.b16 %v548
        %v561 = vunpack.c.l.b16 %v549
        %v562 = vunpack.c.l.b16 %v550
        %v563 = vunpack.c.l.b16 %v551
        %v564 = vpack.c.b16 %v561, %v560
        %v565 = vpack.c.b16 %v563, %v562
        %vm568 = vcmask 261120
        %v570 = vsel %vm568, %v545, 0
        %572 = vmatpush.bf16.msra.mxu0 0
        %573 = vmatpush.bf16.msra.mxu0 0
        %574 = vmatpush.bf16.msra.mxu0 0
        %575 = vmatpush.bf16.msra.mxu0 0
        %576 = vmatpush.bf16.msra.mxu0 0
        %577 = vmatpush.bf16.msra.mxu0 0
        %578 = vmatpush.bf16.msra.mxu0 %v565
        %579 = vmatpush.bf16.msra.mxu0 %v564
        %580 = vmatmul.bf16.gmra.mxu0 %v570
        %v581 = vpop.f32.mrf.mxu0
        %v582 = vadd.f32 %v554, %v581
        %v583 = vpop.f32.mrf.mxu0
        %584 = vdwg.mxu0
        %v585 = vld [vmem:[#allocation8] sm:$0xf]
        %v586 = vld [vmem:[#allocation8 + $0x4] sm:$0xf]
        %v587 = vld [vmem:[#allocation8 + $0x8] sm:$0xf]
        %v588 = vld [vmem:[%s6] sm:$0x1]
        %v590 = vperm.slane %v588, 0
        %v594 = vunpack.c.l.b16 %v546
        %v595 = vunpack.c.l.b16 %v547
        %v596 = vpack.c.b16 %v595, %v594
        %v600 = vunpack.c.l.b16 %v585
        %v601 = vunpack.c.l.b16 %v586
        %v602 = vunpack.c.l.b16 %v587
        %v603 = vpack.c.b16 %v601, %v600
        %v604 = vpack.c.b16 %v602, %v602
        %vm606 = vcmask 195584
        %v608 = vsel %vm606, %v596, 0
        %vm610 = vcmask 1043456
        %v612 = vsel %vm610, %v604, 0
        %614 = vmatpush.bf16.msra.mxu0 0
        %615 = vmatpush.bf16.msra.mxu0 0
        %616 = vmatpush.bf16.msra.mxu0 0
        %617 = vmatpush.bf16.msra.mxu0 0
        %618 = vmatpush.bf16.msra.mxu0 0
        %619 = vmatpush.bf16.msra.mxu0 0
        %620 = vmatpush.bf16.msra.mxu0 %v612
        %621 = vmatpush.bf16.msra.mxu0 %v603
        %622 = vmatmul.bf16.gmra.mxu0 %v608
        %v623 = vpop.f32.mrf.mxu0
        %v624 = vadd.f32 %v590, %v623
        %v625 = vpop.f32.mrf.mxu0
        %v626 = vadd.f32 %v590, %v625
        %627 = vdwg.mxu0
        %v628 = vld [vmem:[#allocation10] sm:$0xf]
        %v629 = vld [vmem:[#allocation10 + $0x4] sm:$0xf]
        %v630 = vld [vmem:[#allocation10 + $0x8] sm:$0xf]
        %v631 = vld [vmem:[%s8] sm:$0x1]
        %v633 = vperm.slane %v631, 0
        %v638 = vunpack.c.l.b16 %v628
        %v639 = vunpack.c.l.b16 %v629
        %v640 = vunpack.c.l.b16 %v630
        %v641 = vpack.c.b16 %v639, %v638
        %v642 = vpack.c.b16 %v640, %v640
        %v645 = vsel %vm610, %v642, 0
        %647 = vmatpush.bf16.msra.mxu0 0
        %648 = vmatpush.bf16.msra.mxu0 0
        %649 = vmatpush.bf16.msra.mxu0 0
        %650 = vmatpush.bf16.msra.mxu0 0
        %651 = vmatpush.bf16.msra.mxu0 0
        %652 = vmatpush.bf16.msra.mxu0 0
        %653 = vmatpush.bf16.msra.mxu0 %v645
        %654 = vmatpush.bf16.msra.mxu0 %v641
        %655 = vmatmul.bf16.gmra.mxu0 %v608
        %v656 = vpop.f32.mrf.mxu0
        %v657 = vadd.f32 %v633, %v656
        %v658 = vpop.f32.mrf.mxu0
        %v659 = vadd.f32 %v633, %v658
        %660 = vdwg.mxu0
        %662 = vrot.lane.b32.xlu0 %v582, 120
        %v663 = vpop.permute.xlu0 %662
        %665 = vrot.lane.b32.xlu0 %v582, 112
        %v666 = vpop.permute.xlu0 %665
        %668 = vrot.lane.b32.xlu0 %v582, 104
        %v669 = vpop.permute.xlu0 %668
        %v671 = vpack.c.bf16 %v582, %v582
        %v672 = vpack.c.bf16 %v663, %v663
        %v673 = vpack.c.bf16 %v666, %v666
        %v674 = vpack.c.bf16 %v669, %v669
        %677 = vrot.lane.b32.xlu0 %v624, 120
        %v678 = vpop.permute.xlu0 %677
        %679 = vrot.lane.b32.xlu0 %v626, 120
        %v680 = vpop.permute.xlu0 %679
        %683 = vrot.lane.b32.xlu0 %v624, 112
        %v684 = vpop.permute.xlu0 %683
        %685 = vrot.lane.b32.xlu0 %v626, 112
        %v686 = vpop.permute.xlu0 %685
        %689 = vrot.lane.b32.xlu0 %v624, 104
        %v690 = vpop.permute.xlu0 %689
        %691 = vrot.lane.b32.xlu0 %v626, 104
        %v692 = vpop.permute.xlu0 %691
        %v695 = vpack.c.bf16 %v624, %v624
        %v696 = vpack.c.bf16 %v626, %v626
        %v697 = vpack.c.bf16 %v678, %v678
        %v698 = vpack.c.bf16 %v680, %v680
        %v699 = vpack.c.bf16 %v684, %v684
        %v700 = vpack.c.bf16 %v686, %v686
        %v701 = vpack.c.bf16 %v690, %v690
        %v702 = vpack.c.bf16 %v692, %v692
        %705 = vrot.lane.b32.xlu0 %v657, 120
        %v706 = vpop.permute.xlu0 %705
        %707 = vrot.lane.b32.xlu0 %v659, 120
        %v708 = vpop.permute.xlu0 %707
        %711 = vrot.lane.b32.xlu0 %v657, 112
        %v712 = vpop.permute.xlu0 %711
        %713 = vrot.lane.b32.xlu0 %v659, 112
        %v714 = vpop.permute.xlu0 %713
        %717 = vrot.lane.b32.xlu0 %v657, 104
        %v718 = vpop.permute.xlu0 %717
        %719 = vrot.lane.b32.xlu0 %v659, 104
        %v720 = vpop.permute.xlu0 %719
        %v723 = vpack.c.bf16 %v657, %v657
        %v724 = vpack.c.bf16 %v659, %v659
        %v725 = vpack.c.bf16 %v706, %v706
        %v726 = vpack.c.bf16 %v708, %v708
        %v727 = vpack.c.bf16 %v712, %v712
        %v728 = vpack.c.bf16 %v714, %v714
        %v729 = vpack.c.bf16 %v718, %v718
        %v730 = vpack.c.bf16 %v720, %v720
        %v733 = vunpack.c.l.b16 %v695
        %v734 = vunpack.c.l.b16 %v696
        %v735 = vpack.c.b16 %v734, %v733
        %vm736 = vcmask 64512
        %v738 = vsel %vm736, %v671, 0
        %v741 = vsel %vm736, %v735, 0
        %743 = vmatpush.bf16.xpose.msra.mxu0 0
        %744 = vmatpush.bf16.xpose.msra.mxu0 0
        %745 = vmatpush.bf16.xpose.msra.mxu0 0
        %746 = vmatpush.bf16.xpose.msra.mxu0 0
        %747 = vmatpush.bf16.xpose.msra.mxu0 0
        %748 = vmatpush.bf16.xpose.msra.mxu0 0
        %749 = vmatpush.bf16.xpose.msra.mxu0 0
        %750 = vmatpush.bf16.xpose.msra.mxu0 %v741
        %751 = vmatmul.bf16.gmra.mxu0 %v738
        %v752 = vpop.f32.mrf.mxu0
        %v753 = vadd.f32 0.0, %v752
        %v754 = vpop.f32.mrf.mxu0
        %755 = vdwg.mxu0
        %v758 = vunpack.c.l.b16 %v697
        %v759 = vunpack.c.l.b16 %v698
        %v760 = vpack.c.b16 %v759, %v758
        %v762 = vsel %vm736, %v672, 0
        %v765 = vsel %vm736, %v760, 0
        %767 = vmatpush.bf16.xpose.msra.mxu0 0
        %768 = vmatpush.bf16.xpose.msra.mxu0 0
        %769 = vmatpush.bf16.xpose.msra.mxu0 0
        %770 = vmatpush.bf16.xpose.msra.mxu0 0
        %771 = vmatpush.bf16.xpose.msra.mxu0 0
        %772 = vmatpush.bf16.xpose.msra.mxu0 0
        %773 = vmatpush.bf16.xpose.msra.mxu0 0
        %774 = vmatpush.bf16.xpose.msra.mxu0 %v765
        %775 = vmatmul.bf16.gmra.mxu0 %v762
        %v776 = vpop.f32.mrf.mxu0
        %v777 = vadd.f32 0.0, %v776
        %v778 = vpop.f32.mrf.mxu0
        %779 = vdwg.mxu0
        %v782 = vunpack.c.l.b16 %v699
        %v783 = vunpack.c.l.b16 %v700
        %v784 = vpack.c.b16 %v783, %v782
        %v786 = vsel %vm736, %v673, 0
        %v789 = vsel %vm736, %v784, 0
        %791 = vmatpush.bf16.xpose.msra.mxu0 0
        %792 = vmatpush.bf16.xpose.msra.mxu0 0
        %793 = vmatpush.bf16.xpose.msra.mxu0 0
        %794 = vmatpush.bf16.xpose.msra.mxu0 0
        %795 = vmatpush.bf16.xpose.msra.mxu0 0
        %796 = vmatpush.bf16.xpose.msra.mxu0 0
        %797 = vmatpush.bf16.xpose.msra.mxu0 0
        %798 = vmatpush.bf16.xpose.msra.mxu0 %v789
        %799 = vmatmul.bf16.gmra.mxu0 %v786
        %v800 = vpop.f32.mrf.mxu0
        %v801 = vadd.f32 0.0, %v800
        %v802 = vpop.f32.mrf.mxu0
        %803 = vdwg.mxu0
        %v806 = vunpack.c.l.b16 %v701
        %v807 = vunpack.c.l.b16 %v702
        %v808 = vpack.c.b16 %v807, %v806
        %v810 = vsel %vm736, %v674, 0
        %v813 = vsel %vm736, %v808, 0
        %815 = vmatpush.bf16.xpose.msra.mxu0 0
        %816 = vmatpush.bf16.xpose.msra.mxu0 0
        %817 = vmatpush.bf16.xpose.msra.mxu0 0
        %818 = vmatpush.bf16.xpose.msra.mxu0 0
        %819 = vmatpush.bf16.xpose.msra.mxu0 0
        %820 = vmatpush.bf16.xpose.msra.mxu0 0
        %821 = vmatpush.bf16.xpose.msra.mxu0 0
        %822 = vmatpush.bf16.xpose.msra.mxu0 %v813
        %823 = vmatmul.bf16.gmra.mxu0 %v810
        %v824 = vpop.f32.mrf.mxu0
        %v825 = vadd.f32 0.0, %v824
        %v826 = vpop.f32.mrf.mxu0
        %827 = vdwg.mxu0
        %v828 = vmul.f32 %v753, 0.35355338
        %v829 = vmul.f32 %v777, 0.35355338
        %v830 = vmul.f32 %v801, 0.35355338
        %v831 = vmul.f32 %v825, 0.35355338
        %v832 = vld [vmem:[%s468] sm:$0x1]
        %vm833 = vcmp.gt.s32.totalorder %v832, 0
        %v834 = vsel %vm833, 1, 0
        %v835 = vperm.slane %v834, 0
        %vm836 = vcmp.eq.s32.totalorder %v835, 1
        %v837 = vsel %vm836, -3.4028235e+38, %v828
        %v838 = vsel %vm836, -3.4028235e+38, %v829
        %v839 = vsel %vm836, -3.4028235e+38, %v830
        %v840 = vsel %vm836, -3.4028235e+38, %v831
        %vm841 = vcmask 97280
        %v842 = vsel %vm841, %v837, -inf
        %843 = vmax.xlane.f32.xlu0 %v842
        %v844 = vpop.xlane.xlu0 %843
        %v845 = vsel %vm841, %v838, -inf
        %846 = vmax.xlane.f32.xlu0 %v845
        %v847 = vpop.xlane.xlu0 %846
        %v848 = vsel %vm841, %v839, -inf
        %849 = vmax.xlane.f32.xlu0 %v848
        %v850 = vpop.xlane.xlu0 %849
        %v851 = vsel %vm841, %v840, -inf
        %852 = vmax.xlane.f32.xlu0 %v851
        %v853 = vpop.xlane.xlu0 %852
        %v854 = vsub.f32 %v837, %v844
        %v855 = vsub.f32 %v838, %v847
        %v856 = vsub.f32 %v839, %v850
        %v857 = vsub.f32 %v840, %v853
        %v858 = vmul.f32 %v854, 1.442695
        %v859 = vpow.pop %v858
        %v860 = vmul.f32 %v855, 1.442695
        %v861 = vpow.pop %v860
        %v862 = vmul.f32 %v856, 1.442695
        %v863 = vpow.pop %v862
        %v864 = vmul.f32 %v857, 1.442695
        %v865 = vpow.pop %v864
        %v866 = vsel %vm841, %v859, 0.0
        %867 = vadd.xlane.f32.xlu0 %v866
        %v868 = vpop.xlane.xlu0 %867
        %v869 = vsel %vm841, %v861, 0.0
        %870 = vadd.xlane.f32.xlu0 %v869
        %v871 = vpop.xlane.xlu0 %870
        %v872 = vsel %vm841, %v863, 0.0
        %873 = vadd.xlane.f32.xlu0 %v872
        %v874 = vpop.xlane.xlu0 %873
        %v875 = vsel %vm841, %v865, 0.0
        %876 = vadd.xlane.f32.xlu0 %v875
        %v877 = vpop.xlane.xlu0 %876
        %v878 = vrcp.pop %v868
        %v879 = vmul.f32 %v868, %v878
        %v880 = vsub.f32 1.0, %v879
        %v881 = vmul.f32 %v878, %v880
        %v882 = vadd.f32 %v878, %v881
        %vm883 = vweird.f32 %v868
        %vm884 = vweird.f32 %v878
        %vm885 = vmor %vm883, %vm884
        %v886 = vsel %vm885, %v878, %v882
        %v887 = vand.u32 2147483647, %v868
        %vm888 = vcmp.eq.f32.partialorder %v887, 8.507059e+37
        %v889 = vand.u32 %v868, 2147483648
        %v890 = vor.u32 1.1754944e-38, %v889
        %v891 = vsel %vm888, %v890, %v886
        %v892 = vrcp.pop %v871
        %v893 = vmul.f32 %v871, %v892
        %v894 = vsub.f32 1.0, %v893
        %v895 = vmul.f32 %v892, %v894
        %v896 = vadd.f32 %v892, %v895
        %vm897 = vweird.f32 %v871
        %vm898 = vweird.f32 %v892
        %vm899 = vmor %vm897, %vm898
        %v900 = vsel %vm899, %v892, %v896
        %v901 = vand.u32 2147483647, %v871
        %vm902 = vcmp.eq.f32.partialorder %v901, 8.507059e+37
        %v903 = vand.u32 %v871, 2147483648
        %v904 = vor.u32 1.1754944e-38, %v903
        %v905 = vsel %vm902, %v904, %v900
        %v906 = vrcp.pop %v874
        %v907 = vmul.f32 %v874, %v906
        %v908 = vsub.f32 1.0, %v907
        %v909 = vmul.f32 %v906, %v908
        %v910 = vadd.f32 %v906, %v909
        %vm911 = vweird.f32 %v874
        %vm912 = vweird.f32 %v906
        %vm913 = vmor %vm911, %vm912
        %v914 = vsel %vm913, %v906, %v910
        %v915 = vand.u32 2147483647, %v874
        %vm916 = vcmp.eq.f32.partialorder %v915, 8.507059e+37
        %v917 = vand.u32 %v874, 2147483648
        %v918 = vor.u32 1.1754944e-38, %v917
        %v919 = vsel %vm916, %v918, %v914
        %v920 = vrcp.pop %v877
        %v921 = vmul.f32 %v877, %v920
        %v922 = vsub.f32 1.0, %v921
        %v923 = vmul.f32 %v920, %v922
        %v924 = vadd.f32 %v920, %v923
        %vm925 = vweird.f32 %v877
        %vm926 = vweird.f32 %v920
        %vm927 = vmor %vm925, %vm926
        %v928 = vsel %vm927, %v920, %v924
        %v929 = vand.u32 2147483647, %v877
        %vm930 = vcmp.eq.f32.partialorder %v929, 8.507059e+37
        %v931 = vand.u32 %v877, 2147483648
        %v932 = vor.u32 1.1754944e-38, %v931
        %v933 = vsel %vm930, %v932, %v928
        %v934 = vmul.f32 %v859, %v891
        %v935 = vmul.f32 %v861, %v905
        %v936 = vmul.f32 %v863, %v919
        %v937 = vmul.f32 %v865, %v933
        %v938 = vsel %vm836, 0.0, %v934
        %v939 = vsel %vm836, 0.0, %v935
        %v940 = vsel %vm836, 0.0, %v936
        %v941 = vsel %vm836, 0.0, %v937
        %v942 = vpack.c.bf16 %v938, %v938
        %v943 = vpack.c.bf16 %v939, %v939
        %v944 = vpack.c.bf16 %v940, %v940
        %v945 = vpack.c.bf16 %v941, %v941
        %v948 = vunpack.c.l.b16 %v723
        %v949 = vunpack.c.l.b16 %v724
        %v950 = vpack.c.b16 %v949, %v948
        %v952 = vsel %vm841, %v942, 0
        %vm954 = vcmask 1045504
        %v956 = vsel %vm954, %v950, 0
        %958 = vmatpush.bf16.msra.mxu0 0
        %959 = vmatpush.bf16.msra.mxu0 0
        %960 = vmatpush.bf16.msra.mxu0 0
        %961 = vmatpush.bf16.msra.mxu0 0
        %962 = vmatpush.bf16.msra.mxu0 0
        %963 = vmatpush.bf16.msra.mxu0 0
        %964 = vmatpush.bf16.msra.mxu0 0
        %965 = vmatpush.bf16.msra.mxu0 %v956
        %966 = vmatmul.bf16.gmra.mxu0 %v952
        %v967 = vpop.f32.mrf.mxu0
        %v968 = vadd.f32 0.0, %v967
        %v969 = vpop.f32.mrf.mxu0
        %970 = vdwg.mxu0
        %v973 = vunpack.c.l.b16 %v725
        %v974 = vunpack.c.l.b16 %v726
        %v975 = vpack.c.b16 %v974, %v973
        %v977 = vsel %vm841, %v943, 0
        %v980 = vsel %vm954, %v975, 0
        %982 = vmatpush.bf16.msra.mxu0 0
        %983 = vmatpush.bf16.msra.mxu0 0
        %984 = vmatpush.bf16.msra.mxu0 0
        %985 = vmatpush.bf16.msra.mxu0 0
        %986 = vmatpush.bf16.msra.mxu0 0
        %987 = vmatpush.bf16.msra.mxu0 0
        %988 = vmatpush.bf16.msra.mxu0 0
        %989 = vmatpush.bf16.msra.mxu0 %v980
        %990 = vmatmul.bf16.gmra.mxu0 %v977
        %v991 = vpop.f32.mrf.mxu0
        %v992 = vadd.f32 0.0, %v991
        %v993 = vpop.f32.mrf.mxu0
        %994 = vdwg.mxu0
        %v997 = vunpack.c.l.b16 %v727
        %v998 = vunpack.c.l.b16 %v728
        %v999 = vpack.c.b16 %v998, %v997
        %v1001 = vsel %vm841, %v944, 0
        %v1004 = vsel %vm954, %v999, 0
        %1006 = vmatpush.bf16.msra.mxu0 0
        %1007 = vmatpush.bf16.msra.mxu0 0
        %1008 = vmatpush.bf16.msra.mxu0 0
        %1009 = vmatpush.bf16.msra.mxu0 0
        %1010 = vmatpush.bf16.msra.mxu0 0
        %1011 = vmatpush.bf16.msra.mxu0 0
        %1012 = vmatpush.bf16.msra.mxu0 0
        %1013 = vmatpush.bf16.msra.mxu0 %v1004
        %1014 = vmatmul.bf16.gmra.mxu0 %v1001
        %v1015 = vpop.f32.mrf.mxu0
        %v1016 = vadd.f32 0.0, %v1015
        %v1017 = vpop.f32.mrf.mxu0
        %1018 = vdwg.mxu0
        %v1021 = vunpack.c.l.b16 %v729
        %v1022 = vunpack.c.l.b16 %v730
        %v1023 = vpack.c.b16 %v1022, %v1021
        %v1025 = vsel %vm841, %v945, 0
        %v1028 = vsel %vm954, %v1023, 0
        %1030 = vmatpush.bf16.msra.mxu0 0
        %1031 = vmatpush.bf16.msra.mxu0 0
        %1032 = vmatpush.bf16.msra.mxu0 0
        %1033 = vmatpush.bf16.msra.mxu0 0
        %1034 = vmatpush.bf16.msra.mxu0 0
        %1035 = vmatpush.bf16.msra.mxu0 0
        %1036 = vmatpush.bf16.msra.mxu0 0
        %1037 = vmatpush.bf16.msra.mxu0 %v1028
        %1038 = vmatmul.bf16.gmra.mxu0 %v1025
        %v1039 = vpop.f32.mrf.mxu0
        %v1040 = vadd.f32 0.0, %v1039
        %v1041 = vpop.f32.mrf.mxu0
        %1042 = vdwg.mxu0
        %1044 = vrot.lane.b32.xlu0 %v992, 8
        %v1045 = vpop.permute.xlu0 %1044
        %1048 = vrot.lane.b32.xlu0 %v1016, 16
        %v1049 = vpop.permute.xlu0 %1048
        %1052 = vrot.lane.b32.xlu0 %v1040, 24
        %v1053 = vpop.permute.xlu0 %1052
        %v1055 = vsel %vm736, %v968, %v1045
        %vm1056 = vcmask 130048
        %v1057 = vsel %vm1056, %v1055, %v1049
        %v1058 = vsel %vm606, %v1057, %v1053
        %v1059 = vpack.c.bf16 %v1058, %v1058
        %v1060 = vld [vmem:[%s9] sm:$0xf]
        %v1061 = vld [vmem:[%s9 + $0x4] sm:$0xf]
        %v1062 = vld [vmem:[%s9 + $0x8] sm:$0xf]
        %v1063 = vld [vmem:[%s9 + $0xc] sm:$0xf]
        %v1064 = vld [vmem:[%s10] sm:$0x1]
        %v1066 = vperm.slane %v1064, 0
        %v1072 = vunpack.c.l.b16 %v1060
        %v1073 = vunpack.c.l.b16 %v1061
        %v1074 = vunpack.c.l.b16 %v1062
        %v1075 = vunpack.c.l.b16 %v1063
        %v1076 = vpack.c.b16 %v1073, %v1072
        %v1077 = vpack.c.b16 %v1075, %v1074
        %v1081 = vsel %vm568, %v1059, 0
        %1083 = vmatpush.bf16.msra.mxu0 0
        %1084 = vmatpush.bf16.msra.mxu0 0
        %1085 = vmatpush.bf16.msra.mxu0 0
        %1086 = vmatpush.bf16.msra.mxu0 0
        %1087 = vmatpush.bf16.msra.mxu0 0
        %1088 = vmatpush.bf16.msra.mxu0 0
        %1089 = vmatpush.bf16.msra.mxu0 %v1077
        %1090 = vmatpush.bf16.msra.mxu0 %v1076
        %1091 = vmatmul.bf16.gmra.mxu0 %v1081
        %v1092 = vpop.f32.mrf.mxu0
        %v1093 = vadd.f32 %v1066, %v1092
        %v1094 = vpop.f32.mrf.mxu0
        %1095 = vdwg.mxu0
        %1096 = vst.msk [vmem:[%s531] sm:$0xff] %vm568, %v1093
        %v1097 = vsel %vm841, %v938, 0.0
        %v1098 = vsel %vm841, %v939, 0.0
        %v1099 = vadd.f32 %v1097, %v1098
        %v1100 = vsel %vm841, %v940, 0.0
        %v1101 = vadd.f32 %v1099, %v1100
        %v1102 = vsel %vm841, %v941, 0.0
        %v1103 = vadd.f32 %v1101, %v1102
        %v1104 = vmul.f32 %v1103, 0.25
        %1105 = vst.msk [vmem:[%s538] sm:$0xff] %vm841, %v1104
        %s1106 = sand.u32 %s291, 1
        %s1107 = scalar_lea.sflag [#allocation4], %s1106
        %s1108 = sand.u32 %s291, 1
        %s1109 = smul.addr %s1108, 8
        %s1110 = scalar_lea.vmem [#allocation11], %s1109
        %s1111 = sand.u32 %s317, 1
        %s1112 = scalar_lea.sflag [#allocation13], %s1111
        %s1113 = sand.u32 %s317, 1
        %s1114 = smul.addr %s1113, 8
        %s1115 = scalar_lea.vmem [#allocation12], %s1114
        // Predicated region
        $region85: #{tpu_custom_call.1} parent=63 // pred_check
          %p1116 = pneg %p301
        $region86: #{tpu_custom_call.1} parent=63 // pred_check_branch
          %1118 = sbr.rel (%p1116) target = $region88
        $region87: #{tpu_custom_call.1} parent=63 // pred_region
          %1120 = vsyncadd %s1107, 0
          %s1121 = smul.addr %s37, 8
          %s1122 = scalar_lea.hbm %s11, %s1121
          %s1124 = sshll.u32 %s1110, 4
          %s1125 = int_to_ptr.vmem [resolvable:$true] %s1124
          %s1126 = sshll.u32 %s1122, 4
          %s1127 = int_to_ptr.hbm [resolvable:$true] %s1126
          %1129 = dma.vmem_to_hbm [thread:$0]  %s1125, 128, %s1127, %s1107
        $region88: #{tpu_custom_call.1} parent=63 // pred_fallthru
          _
        // Predicated region
        $region89: #{tpu_custom_call.1} parent=63 // pred_check
          %p1130 = pneg %p327
        $region90: #{tpu_custom_call.1} parent=63 // pred_check_branch
          %1132 = sbr.rel (%p1130) target = $region92
        $region91: #{tpu_custom_call.1} parent=63 // pred_region
          %1134 = vsyncadd %s1112, 0
          %s1135 = smul.addr %s37, 8
          %s1136 = scalar_lea.hbm %s12, %s1135
          %s1138 = sshll.u32 %s1115, 4
          %s1139 = int_to_ptr.vmem [resolvable:$true] %s1138
          %s1140 = sshll.u32 %s1136, 4
          %s1141 = int_to_ptr.hbm [resolvable:$true] %s1140
          %1143 = dma.vmem_to_hbm [thread:$0]  %s1139, 128, %s1141, %s1112
        $region92: #{tpu_custom_call.1} parent=63 // pred_fallthru
          _
      $region64: #{tpu_custom_call.1} parent=5 // pred_fallthru
        _
      %p1144 = scmp.le.s32.totalorder 2, %s32
      // Predicated region
      $region93: #{tpu_custom_call.1} parent=5 // pred_check
        %p1145 = pneg %p1144
      $region94: #{tpu_custom_call.1} parent=5 // pred_check_branch
        %1147 = sbr.rel (%p1145) target = $region96
      $region95: #{tpu_custom_call.1} parent=5 // pred_region
        %s1148 = ssub.s32 %s32, 2
        // Predicated region
        $region97: #{tpu_custom_call.1} parent=95 // pred_check
          %p1149 = pneg %p307
        $region98: #{tpu_custom_call.1} parent=95 // pred_check_branch
          %1151 = sbr.rel (%p1149) target = $region100
        $region99: #{tpu_custom_call.1} parent=95 // pred_region
          %s1152 = sand.u32 %s292, 1
          %s1153 = scalar_lea.sflag [#allocation4], %s1152
          %s1154 = sand.u32 %s292, 1
          %s1155 = smul.addr %s1154, 8
          %s1156 = scalar_lea.vmem [#allocation11], %s1155
          %1158 = dma.done %s1153, 128
        $region100: #{tpu_custom_call.1} parent=95 // pred_fallthru
          _
        // Predicated region
        $region101: #{tpu_custom_call.1} parent=95 // pred_check
          %p1159 = pneg %p333
        $region102: #{tpu_custom_call.1} parent=95 // pred_check_branch
          %1161 = sbr.rel (%p1159) target = $region104
        $region103: #{tpu_custom_call.1} parent=95 // pred_region
          %s1162 = sand.u32 %s318, 1
          %s1163 = scalar_lea.sflag [#allocation13], %s1162
          %s1164 = sand.u32 %s318, 1
          %s1165 = smul.addr %s1164, 8
          %s1166 = scalar_lea.vmem [#allocation12], %s1165
          %1168 = dma.done %s1163, 128
        $region104: #{tpu_custom_call.1} parent=95 // pred_fallthru
          _
      $region96: #{tpu_custom_call.1} parent=5 // pred_fallthru
        _
    $region6: #{tpu_custom_call.1} parent=1 // loop_footer
      %s36 = sadd.s32 1, %s32
    $region7: #{tpu_custom_call.1} parent=1 // loop_footer_branch
      %31 = sbr.rel target = $region3
    $region8: #{tpu_custom_call.1} parent=1 // loop_exit
      _
    %1169 = vsyncpa [#allocation3], 1
    %s1170 = scalar_lea.sflag [#allocation3], 1
    %1171 = vsyncpa %s1170, 1
    %1172 = vsyncpa [#allocation6], 1
    %s1173 = scalar_lea.sflag [#allocation6], 1
    %1174 = vsyncpa %s1173, 1
    %1175 = vsyncpa [#allocation9], 1
    %1176 = vsyncpa [#allocation4], 1
    %s1177 = scalar_lea.sflag [#allocation4], 1
    %1178 = vsyncpa %s1177, 1
    %1179 = vsyncpa [#allocation13], 1
    %s1180 = scalar_lea.sflag [#allocation13], 1
    %1181 = vsyncpa %s1180, 1

</llo_original>
